<compile_context>
chip_gen: v6e
topology: v6e:2x2x1
jax: 0.10.0
libtpu: 0.0.40
codegen_flags: <defaults>
</compile_context>

<pallas_src>
import functools

import jax
import jax.numpy as jnp
from jax.experimental import pallas as pl
from jax.experimental.pallas import tpu as pltpu


def _round_up(a, b):
    return ((a + b - 1) // b) * b


def _block_diag(w, pack):
    """[in, out] -> [pack*in, pack*out] block-diagonal replication of w."""
    in_f, out_f = w.shape
    eye = jnp.eye(pack, dtype=w.dtype)
    return (eye[:, None, :, None] * w[None, :, None, :]).reshape(
        pack * in_f, pack * out_f)


def _gine_seq_kernel(x_ref, w1_ref, b1_ref, w2_ref, b2_ref, o_ref,
                     *, dropout_p, training, seed):
    # lin1 (MXU, f32 accumulate) + bias + relu in f32 (v5e-friendly VPU math).
    x = x_ref[...]
    h = jnp.dot(x, w1_ref[...], preferred_element_type=jnp.float32)
    h = jnp.maximum(h + b1_ref[...], 0.0)

    # dropout: compile-time gated, only emitted when training with p > 0.
    if training and dropout_p > 0.0:
        pltpu.prng_seed(seed + pl.program_id(0))
        bits = pltpu.bitcast(pltpu.prng_random_bits(h.shape), jnp.uint32)
        thresh = jnp.uint32(min(int(dropout_p * (2 ** 32)), 2 ** 32 - 1))
        h = jnp.where(bits >= thresh, h * (1.0 / (1.0 - dropout_p)), 0.0)

    # lin2: cast activations to the streaming dtype only for the MXU input.
    out = jnp.dot(h.astype(w2_ref.dtype), w2_ref[...],
                  preferred_element_type=jnp.float32)
    o_ref[...] = (out + b2_ref[...]).astype(o_ref.dtype)


def gine_sequential_forward(x, w1, b1, w2, b2, *, dropout_p=0.0,
                            training=False, seed=0, tile_nodes=2048,
                            compute_dtype=jnp.bfloat16):
    """GINE_Sequential forward.

    x  : [N, in_c] f32 node features.
    w1 : [in_c, hid], b1: [hid] (or [1, hid])  -- lin1 (torch weight.T layout)
    w2 : [hid, hid],  b2: [hid] (or [1, hid])  -- lin2 (torch weight.T layout)
    Returns [N, hid] f32.
    """
    n, in_c = x.shape
    hid = w1.shape[1]
    b1 = jnp.asarray(b1, jnp.float32).reshape(1, hid)
    b2 = jnp.asarray(b2, jnp.float32).reshape(1, hid)

    # Pack enough nodes per row that the kernel output is >=128 lanes wide.
    pack = 128 // hid if (hid <= 128 and 128 % hid == 0) else 1

    # Node-tile sizing: multiple of pack*8 (packed sublane alignment), capped
    # by tile_nodes; N padded up to a tile multiple; grid kept >= 2 whenever
    # possible so v7x can shard the parallel axis across its two TensorCores.
    unit = pack * 8
    tile = max(unit, min(int(tile_nodes), _round_up(n, unit)))
    tile = _round_up(tile, unit)
    n_pad = _round_up(n, tile)
    if n_pad // tile < 2 and tile >= 2 * unit:
        half = _round_up(tile // 2, unit)
        if _round_up(n, half) // half >= 2:
            tile, n_pad = half, _round_up(n, half)
    grid = n_pad // tile

    if n_pad != n:
        x = jnp.pad(x, ((0, n_pad - n), (0, 0)))

    rows = n_pad // pack            # packed rows in HBM
    tile_rows = tile // pack        # packed rows per grid step (multiple of 8)

    # Packed operands (row-major reshape of x is free; weights are tiny and
    # stay resident in VMEM since their index_maps are constant).
    x2 = x.reshape(rows, pack * in_c).astype(compute_dtype)
    w1_blk = _block_diag(w1.astype(jnp.float32), pack).astype(compute_dtype)
    w2_blk = _block_diag(w2.astype(jnp.float32), pack).astype(compute_dtype)
    b1_blk = jnp.tile(b1, (1, pack))     # f32
    b2_blk = jnp.tile(b2, (1, pack))     # f32

    kernel = functools.partial(_gine_seq_kernel, dropout_p=float(dropout_p),
                               training=bool(training), seed=int(seed))

    # Advisory cost estimate so XLA schedules/overlaps this op sensibly.
    flops = 2 * rows * ((pack * in_c) * (pack * hid) + (pack * hid) ** 2)
    bytes_accessed = (x2.size * x2.dtype.itemsize
                      + w1_blk.size * w1_blk.dtype.itemsize
                      + w2_blk.size * w2_blk.dtype.itemsize
                      + (b1_blk.size + b2_blk.size) * 4
                      + rows * pack * hid * 4)
    cost = pl.CostEstimate(flops=flops, transcendentals=0,
                           bytes_accessed=bytes_accessed)

    def _call(x_pipeline_mode):
        x_kwargs = ({"pipeline_mode": x_pipeline_mode}
                    if x_pipeline_mode is not None else {})
        return pl.pallas_call(
            kernel,
            out_shape=jax.ShapeDtypeStruct((rows, pack * hid), jnp.float32),
            grid=(grid,),
            in_specs=[
                pl.BlockSpec((tile_rows, pack * in_c), lambda i: (i, 0),
                             **x_kwargs),                                   # x tile
                pl.BlockSpec((pack * in_c, pack * hid), lambda i: (0, 0)),  # W1 blk
                pl.BlockSpec((1, pack * hid), lambda i: (0, 0)),            # b1
                pl.BlockSpec((pack * hid, pack * hid), lambda i: (0, 0)),   # W2 blk
                pl.BlockSpec((1, pack * hid), lambda i: (0, 0)),            # b2
            ],
            out_specs=pl.BlockSpec((tile_rows, pack * hid), lambda i: (i, 0)),
            compiler_params=pltpu.CompilerParams(
                dimension_semantics=("parallel",)),
            cost_estimate=cost,
        )(x2, w1_blk, b1_blk, w2_blk, b2_blk)

    # Per-tile VMEM is only a few hundred KiB even at tile_nodes=2048, far
    # below the scoped-VMEM default on v5e/v6e/v7x, so no vmem_limit override.
    try:
        # Depth-3 buffering on the streamed x tile to hide residual copy-in
        # latency (compute per tile is tiny relative to the DMA).
        out2 = _call(pl.Buffered(3))
    except Exception:
        # pipeline_mode unsupported by this jax/libtpu combo: fall back to the
        # default double-buffered pipeline (within a few percent here).
        out2 = _call(None)

    return out2.reshape(n_pad, hid)[:n]


def _reference(x, w1, b1, w2, b2):
    h = jnp.maximum(x @ w1 + b1.reshape(1, -1), 0.0)
    return h @ w2 + b2.reshape(1, -1)


if __name__ == "__main__":
    key = jax.random.PRNGKey(0)
    in_channels, hidden_channels, dropout = 16, 32, 0.1
    n_nodes = 200   # deliberately not a tile multiple -> exercises padding path

    k_x, k_w1, k_b1, k_w2, k_b2 = jax.random.split(key, 5)

    # Deterministic "PyTorch-style" uniform(-1/sqrt(fan_in), 1/sqrt(fan_in)) init.
    lim1 = 1.0 / (in_channels ** 0.5)
    lim2 = 1.0 / (hidden_channels ** 0.5)
    w1 = jax.random.uniform(k_w1, (in_channels, hidden_channels),
                            jnp.float32, -lim1, lim1)
    b1 = jax.random.uniform(k_b1, (hidden_channels,), jnp.float32, -lim1, lim1)
    w2 = jax.random.uniform(k_w2, (hidden_channels, hidden_channels),
                            jnp.float32, -lim2, lim2)
    b2 = jax.random.uniform(k_b2, (hidden_channels,), jnp.float32, -lim2, lim2)

    x = jax.random.normal(k_x, (n_nodes, in_channels), jnp.float32)

    ref = _reference(x, w1, b1, w2, b2)

    # 1) Exact-parity path: f32 streaming, validates the packed/block-diagonal
    #    formulation against the row-wise reference.
    out_f32 = gine_sequential_forward(x, w1, b1, w2, b2, dropout_p=dropout,
                                      training=False,
                                      compute_dtype=jnp.float32)
    out_f32 = jax.block_until_ready(out_f32)
    assert out_f32.shape == (n_nodes, hidden_channels)
    assert jnp.allclose(out_f32, ref, atol=1e-4, rtol=1e-4), "f32 mismatch"

    # 2) Default fast path: bf16 streaming / MXU inputs, f32 accumulation.
    out = gine_sequential_forward(x, w1, b1, w2, b2, dropout_p=dropout,
                                  training=False)
    out = jax.block_until_ready(out)
    assert out.shape == (n_nodes, hidden_channels)
    assert jnp.allclose(out, ref, atol=1e-1, rtol=5e-2), "bf16 mismatch"

    print("KERNEL_OK")
</pallas_src>

<mosaic_0001>
module attributes {stable_mosaic.version = 11 : i64} {
  func.func @_gine_seq_kernel(%arg0: i32, %arg1: memref<32x64xf32, #tpu.memory_space<vmem>>, %arg2: memref<64x128xf32, #tpu.memory_space<vmem>>, %arg3: memref<1x128xf32, #tpu.memory_space<vmem>>, %arg4: memref<128x128xf32, #tpu.memory_space<vmem>>, %arg5: memref<1x128xf32, #tpu.memory_space<vmem>>, %arg6: memref<32x128xf32, #tpu.memory_space<vmem>>) attributes {dimension_semantics = [#tpu.dimension_semantics<parallel>], iteration_bounds = array<i64: 2>, scalar_prefetch = 0 : i64, scratch_operands = 0 : i64, tpu.core_type = #tpu.core_type<tc>, window_params = [{transform_indices = @transform_0, window_bounds = array<i64: 32, 64>}, {pipeline_mode = #tpu.pipeline_mode<synchronous>, transform_indices = @transform_1, window_bounds = array<i64: 64, 128>}, {pipeline_mode = #tpu.pipeline_mode<synchronous>, transform_indices = @transform_2, window_bounds = array<i64: 1, 128>}, {pipeline_mode = #tpu.pipeline_mode<synchronous>, transform_indices = @transform_3, window_bounds = array<i64: 128, 128>}, {pipeline_mode = #tpu.pipeline_mode<synchronous>, transform_indices = @transform_4, window_bounds = array<i64: 1, 128>}, {transform_indices = @transform_5, window_bounds = array<i64: 32, 128>}]} {
    %c0 = arith.constant 0 : index
    %c0_0 = arith.constant 0 : index
    %0 = vector.load %arg1[%c0, %c0_0] : memref<32x64xf32, #tpu.memory_space<vmem>>, vector<32x64xf32>
    %c0_1 = arith.constant 0 : index
    %c0_2 = arith.constant 0 : index
    %1 = vector.load %arg2[%c0_1, %c0_2] : memref<64x128xf32, #tpu.memory_space<vmem>>, vector<64x128xf32>
    %cst = arith.constant dense<0.000000e+00> : vector<32x128xf32>
    %2 = tpu.matmul %0, %1, %cst {dimension_numbers = #tpu.dot_dimension_numbers<[1], [0], [0], [1], [0, 0, 1, 1], [], []>} : vector<32x64xf32>, vector<64x128xf32>, vector<32x128xf32> -> vector<32x128xf32>
    %c0_3 = arith.constant 0 : index
    %c0_4 = arith.constant 0 : index
    %3 = vector.load %arg3[%c0_3, %c0_4] : memref<1x128xf32, #tpu.memory_space<vmem>>, vector<1x128xf32>
    %4 = vector.broadcast %3 : vector<1x128xf32> to vector<32x128xf32>
    %5 = arith.addf %2, %4 : vector<32x128xf32>
    %cst_5 = arith.constant 0.000000e+00 : f32
    %6 = vector.broadcast %cst_5 : f32 to vector<32x128xf32>
    %7 = arith.maximumf %5, %6 : vector<32x128xf32>
    %c0_6 = arith.constant 0 : index
    %c0_7 = arith.constant 0 : index
    %8 = vector.load %arg4[%c0_6, %c0_7] : memref<128x128xf32, #tpu.memory_space<vmem>>, vector<128x128xf32>
    %cst_8 = arith.constant dense<0.000000e+00> : vector<32x128xf32>
    %9 = tpu.matmul %7, %8, %cst_8 {dimension_numbers = #tpu.dot_dimension_numbers<[1], [0], [0], [1], [0, 0, 1, 1], [], []>} : vector<32x128xf32>, vector<128x128xf32>, vector<32x128xf32> -> vector<32x128xf32>
    %c0_9 = arith.constant 0 : index
    %c0_10 = arith.constant 0 : index
    %10 = vector.load %arg5[%c0_9, %c0_10] : memref<1x128xf32, #tpu.memory_space<vmem>>, vector<1x128xf32>
    %11 = vector.broadcast %10 : vector<1x128xf32> to vector<32x128xf32>
    %12 = arith.addf %9, %11 : vector<32x128xf32>
    %c0_11 = arith.constant 0 : index
    %c0_12 = arith.constant 0 : index
    %13 = vector.load %arg6[%c0_11, %c0_12] : memref<32x128xf32, #tpu.memory_space<vmem>>, vector<32x128xf32>
    tpu.vector_store %arg6[%c0_11, %c0_12], %12 {strides = array<i32>} : memref<32x128xf32, #tpu.memory_space<vmem>>, vector<32x128xf32>,
    return
  }
  func.func @transform_0(%arg0: i32) -> (i32, i32) {
    %c0_i32 = arith.constant 0 : i32
    %c0_i32_0 = arith.constant 0 : i32
    return %arg0, %c0_i32 : i32, i32
  }
  func.func @transform_1(%arg0: i32) -> (i32, i32) {
    %c0_i32 = arith.constant 0 : i32
    %c0_i32_0 = arith.constant 0 : i32
    %c0_i32_1 = arith.constant 0 : i32
    return %c0_i32, %c0_i32_0 : i32, i32
  }
  func.func @transform_2(%arg0: i32) -> (i32, i32) {
    %c0_i32 = arith.constant 0 : i32
    %c0_i32_0 = arith.constant 0 : i32
    %c0_i32_1 = arith.constant 0 : i32
    return %c0_i32, %c0_i32_0 : i32, i32
  }
  func.func @transform_3(%arg0: i32) -> (i32, i32) {
    %c0_i32 = arith.constant 0 : i32
    %c0_i32_0 = arith.constant 0 : i32
    %c0_i32_1 = arith.constant 0 : i32
    return %c0_i32, %c0_i32_0 : i32, i32
  }
  func.func @transform_4(%arg0: i32) -> (i32, i32) {
    %c0_i32 = arith.constant 0 : i32
    %c0_i32_0 = arith.constant 0 : i32
    %c0_i32_1 = arith.constant 0 : i32
    return %c0_i32, %c0_i32_0 : i32, i32
  }
  func.func @transform_5(%arg0: i32) -> (i32, i32) {
    %c0_i32 = arith.constant 0 : i32
    %c0_i32_0 = arith.constant 0 : i32
    return %arg0, %c0_i32 : i32, i32
  }
}

</mosaic_0001>

<llo_original>
// kernel: tpu_custom_call.1
$region0: #{tpu_custom_call.1}
  #allocation0 [shape = 'u32[]', space=smem, size = 0x4, offset = 0x4, fixed_abs, tag = 'smem constant byte address 0x4 - core index']
  #allocation1 [shape = 'u32[144,128]{1,0:T(1,128)}', space=vmem, size = 0x12000, scoped, tag = 'internal scratch']
  %s0 = inlined_call_operand.hbm [shape: f32[64,64], index: 0, kind: input, shape index: {}]
  %s1 = inlined_call_operand.hbm [shape: f32[64,128], index: 1, kind: input, shape index: {}]
  %s2 = inlined_call_operand.vmem [shape: f32[1,128], index: 2, kind: input, shape index: {}]
  %s3 = inlined_call_operand.hbm [shape: f32[128,128], index: 3, kind: input, shape index: {}]
  %s4 = inlined_call_operand.vmem [shape: f32[1,128], index: 4, kind: input, shape index: {}]
  %s5 = inlined_call_operand.hbm [shape: f32[64,128], index: 5, kind: output, shape index: {}]
  %s6 = sld [smem:[#allocation0]]
  $region65: #{tpu_custom_call.1} parent=0
    _
  %s8 = ssub.s32 1, %s6
  %s9 = scalar_select 0, %s8, %s6
  $region1: #{tpu_custom_call.1} parent=0
    #allocation2 [shape = 'u8[32768]{0}', space=vmem, size = 0x8000, scoped, tag = 'input window, operand 0']
    #allocation3 [shape = 's32[2]{0}', space=sflag, size = 0x8, scoped, tag = 'scoped memory for tpu_custom_call.1']
    #allocation4 [shape = 's32[2]{0}', space=sflag, size = 0x8, scoped, tag = 'scoped memory for tpu_custom_call.1']
    #allocation5 [shape = 'u8[32768]{0}', space=vmem, size = 0x8000, scoped, tag = 'input window, operand 1, single buffered']
    #allocation6 [shape = 's32[1]{0}', space=sflag, size = 0x4, scoped, tag = 'scoped memory for tpu_custom_call.1']
    #allocation7 [shape = 'u8[65536]{0}', space=vmem, size = 0x10000, scoped, tag = 'input window, operand 3, single buffered']
    #allocation8 [shape = 'u8[32768]{0}', space=vmem, size = 0x8000, scoped, tag = 'output window, operand 0']
    %10 = vsyncpa [#allocation3], 0
    %s11 = scalar_lea.sflag [#allocation3], 1
    %12 = vsyncpa %s11, 0
    %13 = vsyncpa [#allocation6], 0
    %14 = vsyncpa [#allocation4], 0
    %s15 = scalar_lea.sflag [#allocation4], 1
    %16 = vsyncpa %s15, 0
    loop: start=0, step=1, limit=4
    $region2: #{tpu_custom_call.1} parent=1 // loop_pre_header
      _
    $region3: #{tpu_custom_call.1} parent=1 // loop_header
      %s18 = sphi 0, %s22
      %p19 = scmp.ge.s32.totalorder %s18, 4
      %s28 = sphi 0, %s30
      %s31 = sphi 0, %s28
      %s32 = sphi 0, %s31
      %s48 = sphi 0, %s32
      %s52 = sphi 0, %s52
      %s54 = sphi 0, %s52
      %s55 = sphi 0, %s54
      %s69 = sphi 0, %s55
      %s73 = sphi 0, %s73
      %s75 = sphi 0, %s73
      %s76 = sphi 0, %s75
      %s90 = sphi 0, %s76
      %s94 = sphi 0, %s94
      %s96 = sphi 0, %s94
      %s97 = sphi 0, %s96
      %s111 = sphi 0, %s97
      %s115 = sphi 0, %s115
      %s117 = sphi 0, %s115
      %s118 = sphi 0, %s117
      %s132 = sphi 0, %s118
      %s138 = sphi 0, %s140
      %s141 = sphi 0, %s138
      %s142 = sphi 0, %s141
      %s158 = sphi 0, %s142
    $region4: #{tpu_custom_call.1} parent=1 // loop_header_branch
      %21 = sbr.rel (%p19) target = $region8
    $region5: #{tpu_custom_call.1} parent=1 // loop_body
      %s23 = ssub.s32 %s18, 1
      %s24 = ssub.s32 %s18, 2
      %s25 = sadd.s32 %s18, 1
      %s26 = ssub.s32 %s18, %s25
      %p27 = scmp.eq.s32.totalorder %s26, 0
      %s29 = sadd.s32 %s28, 1
      %s30 = scalar_select %p27, %s28, %s29
      %p33 = pneg %p27
      %p34 = scmp.eq.s32.totalorder %s18, 1
      %p35 = por %p33, %p34
      %p36 = scmp.ne.s32.totalorder %s28, %s31
      %p37 = scmp.eq.s32.totalorder %s18, 0
      %p38 = por %p36, %p37
      %p39 = scmp.ne.s32.totalorder %s28, %s31
      %p40 = scmp.eq.s32.totalorder %s23, 1
      %p41 = por %p39, %p40
      %p42 = scmp.ne.s32.totalorder %s31, %s32
      %p43 = scmp.eq.s32.totalorder %s23, 0
      %p44 = por %p42, %p43
      %p45 = scmp.ne.s32.totalorder %s31, %s32
      %p46 = scmp.eq.s32.totalorder %s24, 1
      %p47 = por %p45, %p46
      %p49 = scmp.ne.s32.totalorder %s32, %s48
      %p50 = scmp.eq.s32.totalorder %s24, 0
      %p51 = por %p49, %p50
      %s53 = sadd.s32 %s52, 1
      %p56 = scmp.eq.s32.totalorder %s18, 1
      %p57 = scmp.ne.s32.totalorder %s52, %s54
      %p58 = scmp.eq.s32.totalorder %s18, 0
      %p59 = por %p57, %p58
      %p60 = scmp.ne.s32.totalorder %s52, %s54
      %p61 = scmp.eq.s32.totalorder %s23, 1
      %p62 = por %p60, %p61
      %p63 = scmp.ne.s32.totalorder %s54, %s55
      %p64 = scmp.eq.s32.totalorder %s23, 0
      %p65 = por %p63, %p64
      %p66 = scmp.ne.s32.totalorder %s54, %s55
      %p67 = scmp.eq.s32.totalorder %s24, 1
      %p68 = por %p66, %p67
      %p70 = scmp.ne.s32.totalorder %s55, %s69
      %p71 = scmp.eq.s32.totalorder %s24, 0
      %p72 = por %p70, %p71
      %s74 = sadd.s32 %s73, 1
      %p77 = scmp.eq.s32.totalorder %s18, 1
      %p78 = scmp.ne.s32.totalorder %s73, %s75
      %p79 = scmp.eq.s32.totalorder %s18, 0
      %p80 = por %p78, %p79
      %p81 = scmp.ne.s32.totalorder %s73, %s75
      %p82 = scmp.eq.s32.totalorder %s23, 1
      %p83 = por %p81, %p82
      %p84 = scmp.ne.s32.totalorder %s75, %s76
      %p85 = scmp.eq.s32.totalorder %s23, 0
      %p86 = por %p84, %p85
      %p87 = scmp.ne.s32.totalorder %s75, %s76
      %p88 = scmp.eq.s32.totalorder %s24, 1
      %p89 = por %p87, %p88
      %p91 = scmp.ne.s32.totalorder %s76, %s90
      %p92 = scmp.eq.s32.totalorder %s24, 0
      %p93 = por %p91, %p92
      %s95 = sadd.s32 %s94, 1
      %p98 = scmp.eq.s32.totalorder %s18, 1
      %p99 = scmp.ne.s32.totalorder %s94, %s96
      %p100 = scmp.eq.s32.totalorder %s18, 0
      %p101 = por %p99, %p100
      %p102 = scmp.ne.s32.totalorder %s94, %s96
      %p103 = scmp.eq.s32.totalorder %s23, 1
      %p104 = por %p102, %p103
      %p105 = scmp.ne.s32.totalorder %s96, %s97
      %p106 = scmp.eq.s32.totalorder %s23, 0
      %p107 = por %p105, %p106
      %p108 = scmp.ne.s32.totalorder %s96, %s97
      %p109 = scmp.eq.s32.totalorder %s24, 1
      %p110 = por %p108, %p109
      %p112 = scmp.ne.s32.totalorder %s97, %s111
      %p113 = scmp.eq.s32.totalorder %s24, 0
      %p114 = por %p112, %p113
      %s116 = sadd.s32 %s115, 1
      %p119 = scmp.eq.s32.totalorder %s18, 1
      %p120 = scmp.ne.s32.totalorder %s115, %s117
      %p121 = scmp.eq.s32.totalorder %s18, 0
      %p122 = por %p120, %p121
      %p123 = scmp.ne.s32.totalorder %s115, %s117
      %p124 = scmp.eq.s32.totalorder %s23, 1
      %p125 = por %p123, %p124
      %p126 = scmp.ne.s32.totalorder %s117, %s118
      %p127 = scmp.eq.s32.totalorder %s23, 0
      %p128 = por %p126, %p127
      %p129 = scmp.ne.s32.totalorder %s117, %s118
      %p130 = scmp.eq.s32.totalorder %s24, 1
      %p131 = por %p129, %p130
      %p133 = scmp.ne.s32.totalorder %s118, %s132
      %p134 = scmp.eq.s32.totalorder %s24, 0
      %p135 = por %p133, %p134
      %s136 = ssub.s32 %s18, %s25
      %p137 = scmp.eq.s32.totalorder %s136, 0
      %s139 = sadd.s32 %s138, 1
      %s140 = scalar_select %p137, %s138, %s139
      %p143 = pneg %p137
      %p144 = scmp.eq.s32.totalorder %s18, 1
      %p145 = por %p143, %p144
      %p146 = scmp.ne.s32.totalorder %s138, %s141
      %p147 = scmp.eq.s32.totalorder %s18, 0
      %p148 = por %p146, %p147
      %p149 = scmp.ne.s32.totalorder %s138, %s141
      %p150 = scmp.eq.s32.totalorder %s23, 1
      %p151 = por %p149, %p150
      %p152 = scmp.ne.s32.totalorder %s141, %s142
      %p153 = scmp.eq.s32.totalorder %s23, 0
      %p154 = por %p152, %p153
      %p155 = scmp.ne.s32.totalorder %s141, %s142
      %p156 = scmp.eq.s32.totalorder %s24, 1
      %p157 = por %p155, %p156
      %p159 = scmp.ne.s32.totalorder %s142, %s158
      %p160 = scmp.eq.s32.totalorder %s24, 0
      %p161 = por %p159, %p160
      %p162 = scmp.le.s32.totalorder 1, %s18
      %p163 = scmp.lt.s32.totalorder %s18, 3
      %p164 = pnand %p162, %p163
      %p165 = pneg %p164
      // Predicated region
      $region9: #{tpu_custom_call.1} parent=5 // pred_check
        _
      $region10: #{tpu_custom_call.1} parent=5 // pred_check_branch
        %167 = sbr.rel (%p164) target = $region12
      $region11: #{tpu_custom_call.1} parent=5 // pred_region
        %s168 = ssub.s32 %s18, 1
        // Predicated region
        $region13: #{tpu_custom_call.1} parent=11 // pred_check
          %p169 = pneg %p65
        $region14: #{tpu_custom_call.1} parent=11 // pred_check_branch
          %171 = sbr.rel (%p169) target = $region16
        $region15: #{tpu_custom_call.1} parent=11 // pred_region
          %s173 = ssub.s32 1024, 1024
          %174 = vsyncadd [#allocation6], %s173
          %s175 = sshll.u32 [#allocation5], 4
          %s176 = int_to_ptr.vmem [resolvable:$true] %s175
          %181 = dma.hbm_to_vmem [thread:$0]  %s1, 1024, %s176, [#allocation6], 128, 128, 8
        $region16: #{tpu_custom_call.1} parent=11 // pred_fallthru
          _
        // Predicated region
        $region17: #{tpu_custom_call.1} parent=11 // pred_check
          %p182 = pneg %p86
        $region18: #{tpu_custom_call.1} parent=11 // pred_check_branch
          %184 = sbr.rel (%p182) target = $region20
        $region19: #{tpu_custom_call.1} parent=11 // pred_region
          _
        $region20: #{tpu_custom_call.1} parent=11 // pred_fallthru
          _
        // Predicated region
        $region21: #{tpu_custom_call.1} parent=11 // pred_check
          %p185 = pneg %p107
        $region22: #{tpu_custom_call.1} parent=11 // pred_check_branch
          %187 = sbr.rel (%p185) target = $region24
        $region23: #{tpu_custom_call.1} parent=11 // pred_region
          %s189 = ssub.s32 2048, 2048
          %190 = vsyncadd [#allocation6], %s189
          %s191 = sshll.u32 [#allocation7], 4
          %s192 = int_to_ptr.vmem [resolvable:$true] %s191
          %197 = dma.hbm_to_vmem [thread:$0]  %s3, 2048, %s192, [#allocation6], 128, 128, 8
        $region24: #{tpu_custom_call.1} parent=11 // pred_fallthru
          _
        // Predicated region
        $region25: #{tpu_custom_call.1} parent=11 // pred_check
          %p198 = pneg %p128
        $region26: #{tpu_custom_call.1} parent=11 // pred_check_branch
          %200 = sbr.rel (%p198) target = $region28
        $region27: #{tpu_custom_call.1} parent=11 // pred_region
          _
        $region28: #{tpu_custom_call.1} parent=11 // pred_fallthru
          _
      $region12: #{tpu_custom_call.1} parent=5 // pred_fallthru
        _
      %p201 = scmp.lt.s32.totalorder %s18, 2
      // Predicated region
      $region29: #{tpu_custom_call.1} parent=5 // pred_check
        %p202 = pneg %p201
      $region30: #{tpu_custom_call.1} parent=5 // pred_check_branch
        %204 = sbr.rel (%p202) target = $region32
      $region31: #{tpu_custom_call.1} parent=5 // pred_region
        // Predicated region
        $region33: #{tpu_custom_call.1} parent=31 // pred_check
          %p205 = pneg %p38
        $region34: #{tpu_custom_call.1} parent=31 // pred_check_branch
          %207 = sbr.rel (%p205) target = $region36
        $region35: #{tpu_custom_call.1} parent=31 // pred_region
          %s208 = sand.u32 %s28, 1
          %s209 = scalar_lea.sflag [#allocation3], %s208
          %s210 = sand.u32 %s28, 1
          %s211 = smul.addr %s210, 32
          %s212 = scalar_lea.vmem [#allocation2], %s211
          %s213 = smul.u32 4, %s18
          %s215 = ssub.s32 512, 512
          %216 = vsyncadd %s209, %s215
          %s217 = smul.addr %s213, 128
          %s218 = scalar_lea.hbm %s0, %s217
          %s219 = sshll.u32 %s212, 4
          %s220 = int_to_ptr.vmem [resolvable:$true] %s219
          %225 = dma.hbm_to_vmem [thread:$0]  %s218, 512, %s220, %s209, 128, 128, 8
        $region36: #{tpu_custom_call.1} parent=31 // pred_fallthru
          _
      $region32: #{tpu_custom_call.1} parent=5 // pred_fallthru
        _
      %p226 = scmp.le.s32.totalorder 1, %s18
      %p227 = scmp.lt.s32.totalorder %s18, 3
      %p228 = pnand %p226, %p227
      %p229 = pneg %p228
      // Predicated region
      $region37: #{tpu_custom_call.1} parent=5 // pred_check
        _
      $region38: #{tpu_custom_call.1} parent=5 // pred_check_branch
        %231 = sbr.rel (%p228) target = $region40
      $region39: #{tpu_custom_call.1} parent=5 // pred_region
        %s232 = ssub.s32 %s18, 1
        %s233 = sand.u32 %s31, 1
        %s234 = scalar_lea.sflag [#allocation3], %s233
        %s235 = sand.u32 %s31, 1
        %s236 = smul.addr %s235, 32
        %s237 = scalar_lea.vmem [#allocation2], %s236
        // Predicated region
        $region41: #{tpu_custom_call.1} parent=39 // pred_check
          %p238 = pneg %p44
        $region42: #{tpu_custom_call.1} parent=39 // pred_check_branch
          %240 = sbr.rel (%p238) target = $region44
        $region43: #{tpu_custom_call.1} parent=39 // pred_region
          %241 = dma.done %s234, 512
        $region44: #{tpu_custom_call.1} parent=39 // pred_fallthru
          _
        // Predicated region
        $region45: #{tpu_custom_call.1} parent=39 // pred_check
          %p242 = pneg %p65
        $region46: #{tpu_custom_call.1} parent=39 // pred_check_branch
          %244 = sbr.rel (%p242) target = $region48
        $region47: #{tpu_custom_call.1} parent=39 // pred_region
          %245 = dma.done [#allocation6], 1024
        $region48: #{tpu_custom_call.1} parent=39 // pred_fallthru
          _
        // Predicated region
        $region49: #{tpu_custom_call.1} parent=39 // pred_check
          %p246 = pneg %p107
        $region50: #{tpu_custom_call.1} parent=39 // pred_check_branch
          %248 = sbr.rel (%p246) target = $region52
        $region51: #{tpu_custom_call.1} parent=39 // pred_region
          %249 = dma.done [#allocation6], 2048
        $region52: #{tpu_custom_call.1} parent=39 // pred_fallthru
          _
        %s250 = sand.u32 %s31, 1
        %s251 = scalar_lea.sflag [#allocation3], %s250
        %s252 = sand.u32 %s31, 1
        %s253 = smul.addr %s252, 32
        %s254 = scalar_lea.vmem [#allocation2], %s253
        %p255 = pneg %p44
        %p256 = pneg %p41
        %p257 = pneg %p65
        %p258 = pneg %p62
        %p259 = pneg %p86
        %p260 = pneg %p83
        %p261 = pneg %p107
        %p262 = pneg %p104
        %p263 = pneg %p128
        %p264 = pneg %p125
        %p265 = pneg %p154
        %p266 = pneg %p151
        %s267 = sand.u32 %s141, 1
        %s268 = scalar_lea.sflag [#allocation4], %s267
        %s269 = sand.u32 %s141, 1
        %s270 = smul.addr %s269, 32
        %s271 = scalar_lea.vmem [#allocation8], %s270
        %s272 = smul.u32 4, %s23
        %s273 = smul.u32 4, %s23
        %v274 = vld [vmem:[%s237] sm:$0xff]
        %v275 = vld [vmem:[%s237 + $0x8] sm:$0xff]
        %v276 = vld [vmem:[%s237 + $0x10] sm:$0xff]
        %v277 = vld [vmem:[%s237 + $0x18] sm:$0xff]
        %v278 = vld [vmem:[#allocation5] sm:$0xff]
        %v279 = vld [vmem:[#allocation5 + $0x8] sm:$0xff]
        %v280 = vld [vmem:[#allocation5 + $0x10] sm:$0xff]
        %v281 = vld [vmem:[#allocation5 + $0x18] sm:$0xff]
        %v282 = vld [vmem:[#allocation5 + $0x20] sm:$0xff]
        %v283 = vld [vmem:[#allocation5 + $0x28] sm:$0xff]
        %v284 = vld [vmem:[#allocation5 + $0x30] sm:$0xff]
        %v285 = vld [vmem:[#allocation5 + $0x38] sm:$0xff]
        %v286 = vld [vmem:[%s2] sm:$0x1]
        %v288 = vlaneseq
        %v289 = vshrl.u32 %v288, 7
        %v290 = vsub.s32 0, %v289
        %v291 = vrot.slane %v286, %v290
        %vm293 = vcmask 523264
        %v295 = vsel %vm293, %v274, 0
        %v298 = vsel %vm293, %v275, 0
        %v301 = vsel %vm293, %v276, 0
        %v304 = vsel %vm293, %v277, 0
        %306 = vmatprep.subr.mxu0 0.0
        %307 = vmatpush1.msra.mxu0 0.0
        %308 = vmatprep.subr.mxu0 0.0
        %309 = vmatpush1.msra.mxu0 0.0
        %310 = vmatprep.subr.mxu0 0.0
        %311 = vmatpush1.msra.mxu0 0.0
        %312 = vmatprep.subr.mxu0 0.0
        %313 = vmatpush1.msra.mxu0 0.0
        %314 = vmatprep.subr.mxu0 0.0
        %315 = vmatpush1.msra.mxu0 0.0
        %316 = vmatprep.subr.mxu0 0.0
        %317 = vmatpush1.msra.mxu0 0.0
        %318 = vmatprep.subr.mxu0 0.0
        %319 = vmatpush1.msra.mxu0 0.0
        %320 = vmatprep.subr.mxu0 0.0
        %321 = vmatpush1.msra.mxu0 0.0
        %322 = vmatprep.subr.mxu0 0.0
        %323 = vmatpush1.msra.mxu0 %v285
        %324 = vmatprep.subr.mxu0 0.0
        %325 = vmatpush1.msra.mxu0 %v284
        %326 = vmatprep.subr.mxu0 0.0
        %327 = vmatpush1.msra.mxu0 %v283
        %328 = vmatprep.subr.mxu0 0.0
        %329 = vmatpush1.msra.mxu0 %v282
        %330 = vmatprep.subr.mxu0 0.0
        %331 = vmatpush1.msra.mxu0 %v281
        %332 = vmatprep.subr.mxu0 0.0
        %333 = vmatpush1.msra.mxu0 %v280
        %334 = vmatprep.subr.mxu0 0.0
        %335 = vmatpush1.msra.mxu0 %v279
        %336 = vmatprep.subr.mxu0 0.0
        %337 = vmatpush1.msra.mxu0 %v278
        %338 = vmatprep.subr.mxu0 0.0
        %339 = vmatpush2.msra.mxu0 0.0
        %340 = vmatprep.subr.mxu0 0.0
        %341 = vmatpush2.msra.mxu0 0.0
        %342 = vmatprep.subr.mxu0 0.0
        %343 = vmatpush2.msra.mxu0 0.0
        %344 = vmatprep.subr.mxu0 0.0
        %345 = vmatpush2.msra.mxu0 0.0
        %346 = vmatprep.subr.mxu0 0.0
        %347 = vmatpush2.msra.mxu0 0.0
        %348 = vmatprep.subr.mxu0 0.0
        %349 = vmatpush2.msra.mxu0 0.0
        %350 = vmatprep.subr.mxu0 0.0
        %351 = vmatpush2.msra.mxu0 0.0
        %352 = vmatprep.subr.mxu0 0.0
        %353 = vmatpush2.msra.mxu0 0.0
        %354 = vmatprep.subr.mxu0 0.0
        %355 = vmatpush2.msra.mxu0 0.0
        %356 = vmatprep.subr.mxu0 0.0
        %357 = vmatpush2.msra.mxu0 0.0
        %358 = vmatprep.subr.mxu0 0.0
        %359 = vmatpush2.msra.mxu0 0.0
        %360 = vmatprep.subr.mxu0 0.0
        %361 = vmatpush2.msra.mxu0 0.0
        %362 = vmatprep.subr.mxu0 0.0
        %363 = vmatpush2.msra.mxu0 0.0
        %364 = vmatprep.subr.mxu0 0.0
        %365 = vmatpush2.msra.mxu0 0.0
        %366 = vmatprep.subr.mxu0 0.0
        %367 = vmatpush2.msra.mxu0 0.0
        %368 = vmatprep.subr.mxu0 0.0
        %369 = vmatpush2.msra.mxu0 0.0
        %370 = vmatprep.mubr.f32.mxu0 0.0
        %371 = vmatmul.mubr.f32.gmra.mxu0 %v295
        %v372 = vpop.f32.mrf.mxu0
        %v373 = vadd.f32 %v291, %v372
        %v374 = vpop.f32.mrf.mxu0
        %375 = vmatprep.mubr.f32.mxu0 0.0
        %376 = vmatmul.mubr.f32.gmra.mxu0 %v298
        %v377 = vpop.f32.mrf.mxu0
        %v378 = vadd.f32 %v291, %v377
        %v379 = vpop.f32.mrf.mxu0
        %380 = vmatprep.mubr.f32.mxu0 0.0
        %381 = vmatmul.mubr.f32.gmra.mxu0 %v301
        %v382 = vpop.f32.mrf.mxu0
        %v383 = vadd.f32 %v291, %v382
        %v384 = vpop.f32.mrf.mxu0
        %385 = vmatprep.mubr.f32.mxu0 0.0
        %386 = vmatmul.mubr.f32.gmra.mxu0 %v304
        %v387 = vpop.f32.mrf.mxu0
        %v388 = vadd.f32 %v291, %v387
        %v389 = vpop.f32.mrf.mxu0
        %390 = vdwg.mxu0
        %v391 = vmax.f32 %v373, 0.0
        %v392 = vmax.f32 %v378, 0.0
        %v393 = vmax.f32 %v383, 0.0
        %v394 = vmax.f32 %v388, 0.0
        %v395 = vld [vmem:[#allocation7] sm:$0xff]
        %v396 = vld [vmem:[#allocation7 + $0x8] sm:$0xff]
        %v397 = vld [vmem:[#allocation7 + $0x10] sm:$0xff]
        %v398 = vld [vmem:[#allocation7 + $0x18] sm:$0xff]
        %v399 = vld [vmem:[#allocation7 + $0x20] sm:$0xff]
        %v400 = vld [vmem:[#allocation7 + $0x28] sm:$0xff]
        %v401 = vld [vmem:[#allocation7 + $0x30] sm:$0xff]
        %v402 = vld [vmem:[#allocation7 + $0x38] sm:$0xff]
        %v403 = vld [vmem:[#allocation7 + $0x40] sm:$0xff]
        %v404 = vld [vmem:[#allocation7 + $0x48] sm:$0xff]
        %v405 = vld [vmem:[#allocation7 + $0x50] sm:$0xff]
        %v406 = vld [vmem:[#allocation7 + $0x58] sm:$0xff]
        %v407 = vld [vmem:[#allocation7 + $0x60] sm:$0xff]
        %v408 = vld [vmem:[#allocation7 + $0x68] sm:$0xff]
        %v409 = vld [vmem:[#allocation7 + $0x70] sm:$0xff]
        %v410 = vld [vmem:[#allocation7 + $0x78] sm:$0xff]
        %v411 = vld [vmem:[%s4] sm:$0x1]
        %v413 = vlaneseq
        %v414 = vshrl.u32 %v413, 7
        %v415 = vsub.s32 0, %v414
        %v416 = vrot.slane %v411, %v415
        %418 = vmatprep.subr.mxu0 0.0
        %419 = vmatpush1.msra.mxu0 %v410
        %420 = vmatprep.subr.mxu0 0.0
        %421 = vmatpush1.msra.mxu0 %v409
        %422 = vmatprep.subr.mxu0 0.0
        %423 = vmatpush1.msra.mxu0 %v408
        %424 = vmatprep.subr.mxu0 0.0
        %425 = vmatpush1.msra.mxu0 %v407
        %426 = vmatprep.subr.mxu0 0.0
        %427 = vmatpush1.msra.mxu0 %v406
        %428 = vmatprep.subr.mxu0 0.0
        %429 = vmatpush1.msra.mxu0 %v405
        %430 = vmatprep.subr.mxu0 0.0
        %431 = vmatpush1.msra.mxu0 %v404
        %432 = vmatprep.subr.mxu0 0.0
        %433 = vmatpush1.msra.mxu0 %v403
        %434 = vmatprep.subr.mxu0 0.0
        %435 = vmatpush1.msra.mxu0 %v402
        %436 = vmatprep.subr.mxu0 0.0
        %437 = vmatpush1.msra.mxu0 %v401
        %438 = vmatprep.subr.mxu0 0.0
        %439 = vmatpush1.msra.mxu0 %v400
        %440 = vmatprep.subr.mxu0 0.0
        %441 = vmatpush1.msra.mxu0 %v399
        %442 = vmatprep.subr.mxu0 0.0
        %443 = vmatpush1.msra.mxu0 %v398
        %444 = vmatprep.subr.mxu0 0.0
        %445 = vmatpush1.msra.mxu0 %v397
        %446 = vmatprep.subr.mxu0 0.0
        %447 = vmatpush1.msra.mxu0 %v396
        %448 = vmatprep.subr.mxu0 0.0
        %449 = vmatpush1.msra.mxu0 %v395
        %450 = vmatprep.subr.mxu0 0.0
        %451 = vmatpush2.msra.mxu0 0.0
        %452 = vmatprep.subr.mxu0 0.0
        %453 = vmatpush2.msra.mxu0 0.0
        %454 = vmatprep.subr.mxu0 0.0
        %455 = vmatpush2.msra.mxu0 0.0
        %456 = vmatprep.subr.mxu0 0.0
        %457 = vmatpush2.msra.mxu0 0.0
        %458 = vmatprep.subr.mxu0 0.0
        %459 = vmatpush2.msra.mxu0 0.0
        %460 = vmatprep.subr.mxu0 0.0
        %461 = vmatpush2.msra.mxu0 0.0
        %462 = vmatprep.subr.mxu0 0.0
        %463 = vmatpush2.msra.mxu0 0.0
        %464 = vmatprep.subr.mxu0 0.0
        %465 = vmatpush2.msra.mxu0 0.0
        %466 = vmatprep.subr.mxu0 0.0
        %467 = vmatpush2.msra.mxu0 0.0
        %468 = vmatprep.subr.mxu0 0.0
        %469 = vmatpush2.msra.mxu0 0.0
        %470 = vmatprep.subr.mxu0 0.0
        %471 = vmatpush2.msra.mxu0 0.0
        %472 = vmatprep.subr.mxu0 0.0
        %473 = vmatpush2.msra.mxu0 0.0
        %474 = vmatprep.subr.mxu0 0.0
        %475 = vmatpush2.msra.mxu0 0.0
        %476 = vmatprep.subr.mxu0 0.0
        %477 = vmatpush2.msra.mxu0 0.0
        %478 = vmatprep.subr.mxu0 0.0
        %479 = vmatpush2.msra.mxu0 0.0
        %480 = vmatprep.subr.mxu0 0.0
        %481 = vmatpush2.msra.mxu0 0.0
        %482 = vmatprep.mubr.f32.mxu0 0.0
        %483 = vmatmul.mubr.f32.gmra.mxu0 %v391
        %v484 = vpop.f32.mrf.mxu0
        %v485 = vadd.f32 %v416, %v484
        %v486 = vpop.f32.mrf.mxu0
        %487 = vmatprep.mubr.f32.mxu0 0.0
        %488 = vmatmul.mubr.f32.gmra.mxu0 %v392
        %v489 = vpop.f32.mrf.mxu0
        %v490 = vadd.f32 %v416, %v489
        %v491 = vpop.f32.mrf.mxu0
        %492 = vmatprep.mubr.f32.mxu0 0.0
        %493 = vmatmul.mubr.f32.gmra.mxu0 %v393
        %v494 = vpop.f32.mrf.mxu0
        %v495 = vadd.f32 %v416, %v494
        %v496 = vpop.f32.mrf.mxu0
        %497 = vmatprep.mubr.f32.mxu0 0.0
        %498 = vmatmul.mubr.f32.gmra.mxu0 %v394
        %v499 = vpop.f32.mrf.mxu0
        %v500 = vadd.f32 %v416, %v499
        %v501 = vpop.f32.mrf.mxu0
        %502 = vdwg.mxu0
        %503 = vst [vmem:[%s271] sm:$0xff] %v485
        %504 = vst [vmem:[%s271 + $0x8] sm:$0xff] %v490
        %505 = vst [vmem:[%s271 + $0x10] sm:$0xff] %v495
        %506 = vst [vmem:[%s271 + $0x18] sm:$0xff] %v500
        %s507 = sand.u32 %s141, 1
        %s508 = scalar_lea.sflag [#allocation4], %s507
        %s509 = sand.u32 %s141, 1
        %s510 = smul.addr %s509, 32
        %s511 = scalar_lea.vmem [#allocation8], %s510
        // Predicated region
        $region53: #{tpu_custom_call.1} parent=39 // pred_check
          %p512 = pneg %p151
        $region54: #{tpu_custom_call.1} parent=39 // pred_check_branch
          %514 = sbr.rel (%p512) target = $region56
        $region55: #{tpu_custom_call.1} parent=39 // pred_region
          %s515 = smul.u32 4, %s23
          %s517 = ssub.s32 512, 512
          %518 = vsyncadd %s508, %s517
          %s519 = smul.addr %s515, 128
          %s520 = scalar_lea.hbm %s5, %s519
          %s521 = sshll.u32 %s511, 4
          %s522 = int_to_ptr.vmem [resolvable:$true] %s521
          %527 = dma.vmem_to_hbm [thread:$0]  %s522, 512, %s520, %s508, 128, 128, 8
        $region56: #{tpu_custom_call.1} parent=39 // pred_fallthru
          _
      $region40: #{tpu_custom_call.1} parent=5 // pred_fallthru
        _
      %p528 = scmp.le.s32.totalorder 2, %s18
      // Predicated region
      $region57: #{tpu_custom_call.1} parent=5 // pred_check
        %p529 = pneg %p528
      $region58: #{tpu_custom_call.1} parent=5 // pred_check_branch
        %531 = sbr.rel (%p529) target = $region60
      $region59: #{tpu_custom_call.1} parent=5 // pred_region
        %s532 = ssub.s32 %s18, 2
        // Predicated region
        $region61: #{tpu_custom_call.1} parent=59 // pred_check
          %p533 = pneg %p157
        $region62: #{tpu_custom_call.1} parent=59 // pred_check_branch
          %535 = sbr.rel (%p533) target = $region64
        $region63: #{tpu_custom_call.1} parent=59 // pred_region
          %s536 = sand.u32 %s142, 1
          %s537 = scalar_lea.sflag [#allocation4], %s536
          %s538 = sand.u32 %s142, 1
          %s539 = smul.addr %s538, 32
          %s540 = scalar_lea.vmem [#allocation8], %s539
          %541 = dma.done %s537, 512
        $region64: #{tpu_custom_call.1} parent=59 // pred_fallthru
          _
      $region60: #{tpu_custom_call.1} parent=5 // pred_fallthru
        _
    $region6: #{tpu_custom_call.1} parent=1 // loop_footer
      %s22 = sadd.s32 1, %s18
    $region7: #{tpu_custom_call.1} parent=1 // loop_footer_branch
      %17 = sbr.rel target = $region3
    $region8: #{tpu_custom_call.1} parent=1 // loop_exit
      _
    %542 = vsyncpa [#allocation3], 1
    %s543 = scalar_lea.sflag [#allocation3], 1
    %544 = vsyncpa %s543, 1
    %545 = vsyncpa [#allocation6], 1
    %546 = vsyncpa [#allocation4], 1
    %s547 = scalar_lea.sflag [#allocation4], 1
    %548 = vsyncpa %s547, 1

</llo_original>
